<compile_context>
chip_gen: v7x
topology: tpu7x:2x2x1
jax: 0.10.0
libtpu: 0.0.40
codegen_flags: <defaults>
</compile_context>

<pallas_src>
import functools
import random

import numpy as np
import jax
import jax.numpy as jnp
from jax.experimental import pallas as pl
from jax.experimental.pallas import tpu as pltpu


# ----------------------------------------------------------------------------
# Pallas kernel
# ----------------------------------------------------------------------------
def _crop_kernel(x_ref, o_ref, *, crop_h, crop_w):
    """x_ref: VMEM (TK, RH, W) with RH >= crop_h; o_ref: VMEM (TK, crop_h, crop_w)."""
    o_ref[...] = x_ref[:, :crop_h, :crop_w]


def _pallas_upper_left_crop(x, crop_h, crop_w, *, max_block_bytes=4 << 20):
    """Return x[..., :crop_h, :crop_w] (top-left crop) computed by a Pallas kernel."""
    *lead, H, W = x.shape
    crop_h = int(crop_h)
    crop_w = int(crop_w)
    assert 1 <= crop_h <= H and 1 <= crop_w <= W
    K = int(np.prod(lead)) if lead else 1
    xr = x.reshape(K, H, W)

    # Only DMA the top source rows we actually need, rounded up to a sublane
    # multiple of 8 so the input block satisfies the (8,128)/full-dim rule.
    rh = min(H, ((crop_h + 7) // 8) * 8)

    # Largest row-tile TK that divides K and keeps the (double-buffered) input
    # block comfortably inside the scoped-VMEM default on every generation.
    itemsize = jnp.dtype(x.dtype).itemsize
    tk = 1
    for cand in range(1, K + 1):
        if K % cand == 0 and cand * rh * W * itemsize <= max_block_bytes:
            tk = cand

    # NOTE: the output's last dim is crop_w (may be < 128 -> masked stores);
    # the output shape is dictated by the module's semantics, so we accept it.
    out = pl.pallas_call(
        functools.partial(_crop_kernel, crop_h=crop_h, crop_w=crop_w),
        out_shape=jax.ShapeDtypeStruct((K, crop_h, crop_w), x.dtype),
        grid=(K // tk,),
        in_specs=[pl.BlockSpec((tk, rh, W), lambda k: (k, 0, 0))],
        out_specs=pl.BlockSpec((tk, crop_h, crop_w), lambda k: (k, 0, 0)),
        compiler_params=pltpu.CompilerParams(
            dimension_semantics=("parallel",)),
    )(xr)
    return out.reshape(tuple(lead) + (crop_h, crop_w))


# ----------------------------------------------------------------------------
# Module wrapper
# ----------------------------------------------------------------------------
class UpperLeftCrop:
    """JAX/Pallas port of the PyTorch UpperLeftCrop noise layer."""

    def __init__(self, min_size=None, max_size=None, random_seed=0):
        self.min_size = min_size
        self.max_size = max_size
        # TODO(synk): torch.randint uses the global torch RNG and is not
        # bit-reproducible here; a seeded Python RNG gives deterministic sizes.
        self._rng = random.Random(random_seed)

    def get_random_size(self, h, w):
        if self.min_size is None or self.max_size is None:
            raise ValueError("min_size and max_size must be provided")
        oh = self._rng.randint(int(self.min_size * h), int(self.max_size * h))
        ow = self._rng.randint(int(self.min_size * w), int(self.max_size * w))
        return oh, ow

    def __call__(self, image, mask, size=None):
        H, W = int(image.shape[-2]), int(image.shape[-1])
        if size is None:
            crop_h, crop_w = self.get_random_size(H, W)
        else:
            crop_h, crop_w = int(size * H), int(size * W)
        # transforms.RandomCrop.get_params only contributes (h, w) == output_size
        # here; the crop origin is fixed at (0, 0) by the module (F.crop(x, 0, 0, h, w)).
        crop_h = max(1, min(crop_h, H))
        crop_w = max(1, min(crop_w, W))
        image_out = _pallas_upper_left_crop(image, crop_h, crop_w)
        mask_out = _pallas_upper_left_crop(mask, crop_h, crop_w)
        return image_out, mask_out


# ----------------------------------------------------------------------------
# Demo / correctness check
# ----------------------------------------------------------------------------
if __name__ == "__main__":
    key = jax.random.PRNGKey(0)
    k_img, k_mask = jax.random.split(key)

    N, C, H, W = 2, 3, 16, 16
    image = jax.random.uniform(k_img, (N, C, H, W), dtype=jnp.float32)
    mask = (jax.random.uniform(k_mask, (N, 1, H, W)) > 0.5).astype(jnp.float32)

    crop = UpperLeftCrop(min_size=0.3, max_size=0.8, random_seed=0)

    # Deterministic size path: size=0.5 -> 8x8 crop.
    img_out, msk_out = crop(image, mask, size=0.5)
    jax.block_until_ready(img_out)
    jax.block_until_ready(msk_out)
    assert img_out.shape == (N, C, 8, 8)
    assert msk_out.shape == (N, 1, 8, 8)
    np.testing.assert_array_equal(np.asarray(img_out), np.asarray(image)[..., :8, :8])
    np.testing.assert_array_equal(np.asarray(msk_out), np.asarray(mask)[..., :8, :8])

    # Non-multiple-of-8 crop: size=0.7 -> 11x11 (exercises the padded-row block path).
    img_out2, msk_out2 = crop(image, mask, size=0.7)
    jax.block_until_ready(img_out2)
    jax.block_until_ready(msk_out2)
    np.testing.assert_array_equal(np.asarray(img_out2), np.asarray(image)[..., :11, :11])
    np.testing.assert_array_equal(np.asarray(msk_out2), np.asarray(mask)[..., :11, :11])

    # Random-size path (seeded) — make sure it runs and matches a host-side slice.
    img_out3, msk_out3 = crop(image, mask)
    jax.block_until_ready(img_out3)
    ch3, cw3 = img_out3.shape[-2], img_out3.shape[-1]
    np.testing.assert_array_equal(np.asarray(img_out3), np.asarray(image)[..., :ch3, :cw3])
    np.testing.assert_array_equal(np.asarray(msk_out3), np.asarray(mask)[..., :ch3, :cw3])

    print("KERNEL_OK")
</pallas_src>

<mosaic_0001>
module attributes {stable_mosaic.version = 11 : i64} {
  func.func @_crop_kernel(%arg0: i32, %arg1: memref<6x8x16xf32, #tpu.memory_space<vmem>>, %arg2: memref<6x8x8xf32, #tpu.memory_space<vmem>>) attributes {dimension_semantics = [#tpu.dimension_semantics<parallel>], iteration_bounds = array<i64: 1>, scalar_prefetch = 0 : i64, scratch_operands = 0 : i64, tpu.core_type = #tpu.core_type<tc>, window_params = [{transform_indices = @transform_0, window_bounds = array<i64: 6, 8, 16>}, {transform_indices = @transform_1, window_bounds = array<i64: 6, 8, 8>}]} {
    %c0 = arith.constant 0 : index
    %c0_0 = arith.constant 0 : index
    %c0_1 = arith.constant 0 : index
    %0 = vector.load %arg1[%c0, %c0_0, %c0_1] : memref<6x8x16xf32, #tpu.memory_space<vmem>>, vector<6x8x8xf32>
    %c0_2 = arith.constant 0 : index
    %c0_3 = arith.constant 0 : index
    %c0_4 = arith.constant 0 : index
    %1 = vector.load %arg2[%c0_2, %c0_3, %c0_4] : memref<6x8x8xf32, #tpu.memory_space<vmem>>, vector<6x8x8xf32>
    tpu.vector_store %arg2[%c0_2, %c0_3, %c0_4], %0 {strides = array<i32>} : memref<6x8x8xf32, #tpu.memory_space<vmem>>, vector<6x8x8xf32>,
    return
  }
  func.func @transform_0(%arg0: i32) -> (i32, i32, i32) {
    %c0_i32 = arith.constant 0 : i32
    %c0_i32_0 = arith.constant 0 : i32
    %c0_i32_1 = arith.constant 0 : i32
    return %arg0, %c0_i32, %c0_i32_0 : i32, i32, i32
  }
  func.func @transform_1(%arg0: i32) -> (i32, i32, i32) {
    %c0_i32 = arith.constant 0 : i32
    %c0_i32_0 = arith.constant 0 : i32
    %c0_i32_1 = arith.constant 0 : i32
    return %arg0, %c0_i32, %c0_i32_0 : i32, i32, i32
  }
}

</mosaic_0001>

<llo_original>
// kernel: tpu_custom_call.1
$region0: #{tpu_custom_call.1}
  #allocation0 [shape = 'u32[]', space=smem, size = 0x4, offset = 0x4, fixed_abs, tag = 'smem constant byte address 0x4 - core index']
  #allocation1 [shape = 'u32[144,128]{1,0:T(1,128)}', space=vmem, size = 0x12000, scoped, tag = 'internal scratch']
  %s0 = inlined_call_operand.hbm [shape: f32[6,16,16], index: 0, kind: input, shape index: {}]
  %s1 = inlined_call_operand.hbm [shape: f32[6,8,8], index: 1, kind: output, shape index: {}]
  %s2 = sld [smem:[#allocation0]]
  $region18: #{tpu_custom_call.1} parent=0
    _
  %s4 = ssub.s32 1, %s2
  %s5 = scalar_select 0, %s4, %s2
  $region1: #{tpu_custom_call.1} parent=0
    #allocation2 [shape = 'u8[24576]{0}', space=vmem, size = 0x6000, scoped, tag = 'input window, operand 0, single buffered']
    #allocation3 [shape = 's32[1]{0}', space=sflag, size = 0x4, scoped, tag = 'scoped memory for tpu_custom_call.1']
    #allocation4 [shape = 's32[1]{0}', space=sflag, size = 0x4, scoped, tag = 'scoped memory for tpu_custom_call.1']
    #allocation5 [shape = 'u8[24576]{0}', space=vmem, size = 0x6000, scoped, tag = 'output window, operand 0, single buffered']
    %6 = vsyncpa [#allocation3], 0
    %7 = vsyncpa [#allocation4], 0
    // Predicated region
    $region2: #{tpu_custom_call.1} parent=1 // pred_check
      _
    $region3: #{tpu_custom_call.1} parent=1 // pred_check_branch
      %9 = sbr.rel (0) target = $region5
    $region4: #{tpu_custom_call.1} parent=1 // pred_region
      %s11 = ssub.s32 768, 768
      %12 = vsyncadd [#allocation3], %s11
      %s13 = sshll.u32 [#allocation2], 4
      %s14 = int_to_ptr.vmem [resolvable:$true] %s13
      %19 = dma.hbm_to_vmem [thread:$0]  %s0, 768, %s14, [#allocation3], 256, 128, 8
    $region5: #{tpu_custom_call.1} parent=1 // pred_fallthru
      _
    // Predicated region
    $region6: #{tpu_custom_call.1} parent=1 // pred_check
      _
    $region7: #{tpu_custom_call.1} parent=1 // pred_check_branch
      %21 = sbr.rel (0) target = $region9
    $region8: #{tpu_custom_call.1} parent=1 // pred_region
      %22 = dma.done [#allocation3], 768
    $region9: #{tpu_custom_call.1} parent=1 // pred_fallthru
      _
    %v23 = vld [vmem:[#allocation2] sm:$0xff]
    %v24 = vld [vmem:[#allocation2 + $0x8] sm:$0xff]
    %v25 = vld [vmem:[#allocation2 + $0x10] sm:$0xff]
    %v26 = vld [vmem:[#allocation2 + $0x18] sm:$0xff]
    %v27 = vld [vmem:[#allocation2 + $0x20] sm:$0xff]
    %v28 = vld [vmem:[#allocation2 + $0x28] sm:$0xff]
    %vm29 = vcmask 64512
    %30 = vst.msk [vmem:[#allocation5] sm:$0xff] %vm29, %v23
    %31 = vst.msk [vmem:[#allocation5 + $0x8] sm:$0xff] %vm29, %v24
    %32 = vst.msk [vmem:[#allocation5 + $0x10] sm:$0xff] %vm29, %v25
    %33 = vst.msk [vmem:[#allocation5 + $0x18] sm:$0xff] %vm29, %v26
    %34 = vst.msk [vmem:[#allocation5 + $0x20] sm:$0xff] %vm29, %v27
    %35 = vst.msk [vmem:[#allocation5 + $0x28] sm:$0xff] %vm29, %v28
    // Predicated region
    $region10: #{tpu_custom_call.1} parent=1 // pred_check
      _
    $region11: #{tpu_custom_call.1} parent=1 // pred_check_branch
      %37 = sbr.rel (0) target = $region13
    $region12: #{tpu_custom_call.1} parent=1 // pred_region
      %s39 = ssub.s32 768, 768
      %40 = vsyncadd [#allocation4], %s39
      %s41 = sshll.u32 [#allocation5], 4
      %s42 = int_to_ptr.vmem [resolvable:$true] %s41
      %47 = dma.vmem_to_hbm [thread:$0]  %s42, 768, %s1, [#allocation4], 128, 128, 8
    $region13: #{tpu_custom_call.1} parent=1 // pred_fallthru
      _
    // Predicated region
    $region14: #{tpu_custom_call.1} parent=1 // pred_check
      _
    $region15: #{tpu_custom_call.1} parent=1 // pred_check_branch
      %49 = sbr.rel (0) target = $region17
    $region16: #{tpu_custom_call.1} parent=1 // pred_region
      %50 = dma.done [#allocation4], 768
    $region17: #{tpu_custom_call.1} parent=1 // pred_fallthru
      _
    %51 = vsyncpa [#allocation3], 1
    %52 = vsyncpa [#allocation4], 1

</llo_original>
